<compile_context>
chip_gen: v5e
topology: v5e:2x2
jax: 0.10.0
libtpu: 0.0.40
codegen_flags: <defaults>
</compile_context>

<pallas_src>
import functools

import jax
import jax.numpy as jnp
from jax.experimental import pallas as pl
from jax.experimental.pallas import tpu as pltpu

_EPS = 1e-5   # torch.nn.BatchNorm1d default eps


# ----------------------------------------------------------------------------
# per-generation budgets
# ----------------------------------------------------------------------------
def _tpu_budgets():
    """(vmem_limit_bytes, row_tile_target) derived from the actual chip."""
    vmem_cap = 128 << 20
    try:
        info = pltpu.get_tpu_info()
        vmem_cap = int(getattr(info, "vmem_capacity_bytes", vmem_cap))
    except Exception:
        pass
    if vmem_cap <= (64 << 20):        # v7x-class: 64 MiB physical per core
        return 32 << 20, 1024
    return 64 << 20, 2048             # v5e / v6e: 128 MiB physical


_VMEM_LIMIT, _ROW_TILE_TARGET = _tpu_budgets()


def _compiler_params(dimension_semantics):
    return pltpu.CompilerParams(dimension_semantics=dimension_semantics,
                                vmem_limit_bytes=_VMEM_LIMIT)


def _row_plan(p, c_in, c_out, itemsize):
    """Pick a row tile bounded by both the target and the VMEM working set.

    Returns (tile, padded_rows); padded_rows is a multiple of tile.  Callers
    zero-pad the row axis to padded_rows and slice outputs back afterwards,
    so the tile never silently degenerates to one giant single-step block.
    """
    # ~ double-buffered input+output tiles plus one f32 temporary per row.
    per_row = 2 * (c_in + c_out) * itemsize + 4 * max(c_in, c_out)
    cap = max(8, ((_VMEM_LIMIT // 2) // per_row) // 8 * 8)
    target = min(_ROW_TILE_TARGET, cap)
    if p <= target:
        return p, p
    target -= target % 8
    lo = max(8, target - 256)
    for t in range(target, lo - 1, -8):          # prefer an exact divisor
        if p % t == 0:
            return t, p
    return target, ((p + target - 1) // target) * target


def _pad_rows(a2d, rows_pad):
    p = a2d.shape[0]
    if rows_pad == p:
        return a2d
    return jnp.pad(a2d, ((0, rows_pad - p), (0, 0)))


def _row_spec(tile, c):
    return pl.BlockSpec((tile, c), lambda i: (i, 0))


def _chan_spec(c):          # (1, c) broadcast across the grid
    return pl.BlockSpec((1, c), lambda i: (0, 0))


def _part_spec(c):          # one (1, c) slice of a (G, 1, c) partial-stats array
    return pl.BlockSpec((None, 1, c), lambda i: (i, 0, 0))


def _bn(hf, s_ref, ss_ref, g_ref, b_ref, count, eps):
    """Normalize with precomputed global per-channel sum / sum-of-squares."""
    inv = 1.0 / count
    mean = s_ref[...] * inv
    var = jnp.maximum(ss_ref[...] * inv - mean * mean, 0.0)   # clamp: no NaN via rsqrt
    return (hf - mean) * jax.lax.rsqrt(var + eps) * g_ref[...] + b_ref[...]


# ----------------------------------------------------------------------------
# Pallas kernels
# ----------------------------------------------------------------------------
def _mm_stats_kernel(x_ref, w_ref, h_ref, s_ref, ss_ref):
    """h = x @ w1; write pre-BN tile; per-tile bn1 partial stats (f32)."""
    h = jnp.dot(x_ref[...], w_ref[...], preferred_element_type=jnp.float32)
    h_ref[...] = h.astype(h_ref.dtype)
    s_ref[...] = jnp.sum(h, axis=0, keepdims=True)
    ss_ref[...] = jnp.sum(h * h, axis=0, keepdims=True)


def _bn1_tapconv_kernel(h1_ref, s1_ref, ss1_ref, g1_ref, b1_ref, w2_ref,
                        h2_ref, s2_ref, ss2_ref, pad_ref,
                        *, k, ds, l_in, l_out, pad, count, eps):
    """bn1+relu fused with the strided k-tap conv2 of one batch element.

    The halo is handled in-kernel: h1n is written into a VMEM scratch whose
    first/last `pad` rows are zeroed (conv2's zero padding applies to the
    post-relu activation).  The k taps are k accumulated MXU dots."""
    mid = h1_ref.shape[-1]
    h1n = jnp.maximum(_bn(h1_ref[...].astype(jnp.float32),
                          s1_ref, ss1_ref, g1_ref, b1_ref, count, eps), 0.0)
    pad_ref[pl.ds(pad, l_in), :] = h1n.astype(pad_ref.dtype)
    if pad > 0:
        pad_ref[pl.ds(0, pad), :] = jnp.zeros((pad, mid), pad_ref.dtype)
        pad_ref[pl.ds(pad + l_in, pad), :] = jnp.zeros((pad, mid), pad_ref.dtype)

    acc = jnp.zeros((l_out, h2_ref.shape[-1]), jnp.float32)
    for t in range(k):
        if ds == 1:
            tap = pad_ref[pl.ds(t, l_out), :]
        else:
            tap = pad_ref[pl.ds(t, l_out, stride=ds), :]
        acc = acc + jnp.dot(tap, w2_ref[t], preferred_element_type=jnp.float32)

    h2_ref[...] = acc.astype(h2_ref.dtype)
    s2_ref[...] = jnp.sum(acc, axis=0, keepdims=True)
    ss2_ref[...] = jnp.sum(acc * acc, axis=0, keepdims=True)


def _bn2_mm3_stats_kernel(h2_ref, s2_ref, ss2_ref, g2_ref, b2_ref, w3_ref,
                          h3_ref, s3_ref, ss3_ref, *, count, eps, rows,
                          mask_rows):
    """relu(bn2(h2_raw)) @ w3, fused; per-tile bn3 partial stats."""
    hn = jnp.maximum(_bn(h2_ref[...].astype(jnp.float32),
                         s2_ref, ss2_ref, g2_ref, b2_ref, count, eps), 0.0)
    h3 = jnp.dot(hn.astype(w3_ref.dtype), w3_ref[...],
                 preferred_element_type=jnp.float32)
    h3_ref[...] = h3.astype(h3_ref.dtype)
    if mask_rows:   # zero-padded rows are not zero after bn2 -> mask the stats
        tile = h3.shape[0]
        ridx = pl.program_id(0) * tile + jax.lax.broadcasted_iota(
            jnp.int32, (tile, 1), 0)
        h3 = jnp.where(ridx < rows, h3, 0.0)
    s3_ref[...] = jnp.sum(h3, axis=0, keepdims=True)
    ss3_ref[...] = jnp.sum(h3 * h3, axis=0, keepdims=True)


def _final_kernel(h3_ref, s3_ref, ss3_ref, g3_ref, b3_ref, y_ref, ws_ref,
                  bs_ref, xo_ref, yo_ref, *, count, eps, ds, identity_skip):
    """bn3(h3_raw) + (avgpool(y) @ ws + bs); x_out = relu(added), y_out = added."""
    h3n = _bn(h3_ref[...].astype(jnp.float32), s3_ref, ss3_ref, g3_ref, b3_ref,
              count, eps)
    tile = h3n.shape[0]
    # AvgPool1d(ds): strided row reads of the flattened 2-D (tile*ds, C_in) tile.
    if ds == 1:
        y_avg = y_ref[...].astype(jnp.float32)
    else:
        acc = y_ref[pl.ds(0, tile, stride=ds), :].astype(jnp.float32)
        for d in range(1, ds):
            acc = acc + y_ref[pl.ds(d, tile, stride=ds), :].astype(jnp.float32)
        y_avg = acc * (1.0 / ds)
    # AvgPool1d commutes with the 1x1 skip conv -> pool first, one matmul after.
    if identity_skip:
        skip = y_avg
    else:
        skip = jnp.dot(y_avg.astype(ws_ref.dtype), ws_ref[...],
                       preferred_element_type=jnp.float32) + bs_ref[...]
    added = h3n + skip
    xo_ref[...] = jnp.maximum(added, 0.0).astype(xo_ref.dtype)  # _activation_3 on x only
    yo_ref[...] = added.astype(yo_ref.dtype)


# ----------------------------------------------------------------------------
# pallas_call wrappers
# ----------------------------------------------------------------------------
def _mm_stats(x2d, w, tile):
    p, cin = x2d.shape
    cout = w.shape[1]
    g = p // tile
    h, s, ss = pl.pallas_call(
        _mm_stats_kernel,
        grid=(g,),
        in_specs=[_row_spec(tile, cin),
                  pl.BlockSpec((cin, cout), lambda i: (0, 0))],
        out_specs=(_row_spec(tile, cout), _part_spec(cout), _part_spec(cout)),
        out_shape=(jax.ShapeDtypeStruct((p, cout), x2d.dtype),
                   jax.ShapeDtypeStruct((g, 1, cout), jnp.float32),
                   jax.ShapeDtypeStruct((g, 1, cout), jnp.float32)),
        compiler_params=_compiler_params(("parallel",)),
    )(x2d, w)
    return h, jnp.sum(s, axis=0), jnp.sum(ss, axis=0)


def _bn1_tapconv(h1_3d, s1, ss1, g1, b1, w2, *, k, ds, l_out, pad, count):
    n, l_in, mid = h1_3d.shape
    cdt = h1_3d.dtype
    h2, s2, ss2 = pl.pallas_call(
        functools.partial(_bn1_tapconv_kernel, k=k, ds=ds, l_in=l_in,
                          l_out=l_out, pad=pad, count=float(count), eps=_EPS),
        grid=(n,),
        in_specs=[pl.BlockSpec((None, l_in, mid), lambda i: (i, 0, 0)),
                  _chan_spec(mid), _chan_spec(mid),
                  _chan_spec(mid), _chan_spec(mid),
                  pl.BlockSpec((k, mid, mid), lambda i: (0, 0, 0))],
        out_specs=(pl.BlockSpec((None, l_out, mid), lambda i: (i, 0, 0)),
                   _part_spec(mid), _part_spec(mid)),
        out_shape=(jax.ShapeDtypeStruct((n, l_out, mid), cdt),
                   jax.ShapeDtypeStruct((n, 1, mid), jnp.float32),
                   jax.ShapeDtypeStruct((n, 1, mid), jnp.float32)),
        scratch_shapes=[pltpu.VMEM((l_in + 2 * pad, mid), cdt)],
        compiler_params=_compiler_params(("parallel",)),
    )(h1_3d, s1, ss1, g1, b1, w2)
    return h2, jnp.sum(s2, axis=0), jnp.sum(ss2, axis=0)


def _bn2_mm3_stats(h2_2d, s2, ss2, g2, b2, w3, tile, *, count, rows, rows_pad):
    p, mid = h2_2d.shape
    cout = w3.shape[1]
    g = p // tile
    h3, s3, ss3 = pl.pallas_call(
        functools.partial(_bn2_mm3_stats_kernel, count=float(count), eps=_EPS,
                          rows=rows, mask_rows=(rows_pad != rows)),
        grid=(g,),
        in_specs=[_row_spec(tile, mid),
                  _chan_spec(mid), _chan_spec(mid),
                  _chan_spec(mid), _chan_spec(mid),
                  pl.BlockSpec((mid, cout), lambda i: (0, 0))],
        out_specs=(_row_spec(tile, cout), _part_spec(cout), _part_spec(cout)),
        out_shape=(jax.ShapeDtypeStruct((p, cout), h2_2d.dtype),
                   jax.ShapeDtypeStruct((g, 1, cout), jnp.float32),
                   jax.ShapeDtypeStruct((g, 1, cout), jnp.float32)),
        compiler_params=_compiler_params(("parallel",)),
    )(h2_2d, s2, ss2, g2, b2, w3)
    return h3, jnp.sum(s3, axis=0), jnp.sum(ss3, axis=0)


def _final(h3, s3, ss3, g3, b3, y2d, ws, bs, *, count, tile, ds, identity_skip):
    p, cout = h3.shape
    cin = y2d.shape[1]
    g = p // tile
    return pl.pallas_call(
        functools.partial(_final_kernel, count=float(count), eps=_EPS, ds=ds,
                          identity_skip=identity_skip),
        grid=(g,),
        in_specs=[_row_spec(tile, cout),
                  _chan_spec(cout), _chan_spec(cout),
                  _chan_spec(cout), _chan_spec(cout),
                  pl.BlockSpec((tile * ds, cin), lambda i: (i, 0)),
                  pl.BlockSpec((cin, cout), lambda i: (0, 0)),
                  _chan_spec(cout)],
        out_specs=(_row_spec(tile, cout), _row_spec(tile, cout)),
        out_shape=(jax.ShapeDtypeStruct((p, cout), h3.dtype),
                   jax.ShapeDtypeStruct((p, cout), h3.dtype)),
        compiler_params=_compiler_params(("parallel",)),
    )(h3, s3, ss3, g3, b3, y2d, ws, bs)


# ----------------------------------------------------------------------------
# layer / block forward (channels-last)
# ----------------------------------------------------------------------------
def bottleneck_layer_pallas(x_nlc, y_nlc, lp, *, kernel_size):
    """One BottleNeckResidualLayer forward; x_nlc, y_nlc: (N, L_in, C_in)."""
    N, L_in, c_in = x_nlc.shape
    k = kernel_size
    ds = lp['downsample']
    pad = (k - 1) // 2
    L_out = L_in // ds
    assert L_in == ds * L_out
    mid = lp['w1m'].shape[1]
    c_out = lp['w3m'].shape[1]
    cdt = lp['w1m'].dtype
    isz = jnp.dtype(cdt).itemsize

    p_in, p_out = N * L_in, N * L_out

    # stage 1: 1x1 conv with per-tile bn1 partial statistics
    t_in, p_in_pad = _row_plan(p_in, c_in, mid, isz)
    x2d = _pad_rows(x_nlc.reshape(p_in, c_in).astype(cdt), p_in_pad)
    h1_raw, s1, ss1 = _mm_stats(x2d, lp['w1m'], t_in)
    if p_in_pad != p_in:
        h1_raw = h1_raw[:p_in]
    h1_3d = h1_raw.reshape(N, L_in, mid)

    # stage 2: bn1+relu fused with the strided k-tap conv (in-kernel zero halo)
    h2_3d, s2, ss2 = _bn1_tapconv(h1_3d, s1, ss1, lp['g1m'], lp['b1m'],
                                  lp['w2m'], k=k, ds=ds, l_out=L_out, pad=pad,
                                  count=p_in)

    # stage 3: bn2+relu fused with the conv3 matmul (+ bn3 partial statistics)
    t_out, p_out_pad = _row_plan(p_out, mid, c_out, isz)
    h2_2d = _pad_rows(h2_3d.reshape(p_out, mid), p_out_pad)
    h3_raw, s3, ss3 = _bn2_mm3_stats(h2_2d, s2, ss2, lp['g2m'], lp['b2m'],
                                     lp['w3m'], t_out, count=p_out,
                                     rows=p_out, rows_pad=p_out_pad)

    # final: bn3 + skip (avg-pool then 1x1 conv) + residual add (+ relu on x)
    y2d = _pad_rows(y_nlc.reshape(p_out * ds, c_in).astype(cdt),
                    p_out_pad * ds)
    x_out, y_out = _final(h3_raw, s3, ss3, lp['g3m'], lp['b3m'], y2d,
                          lp['wsm'], lp['bsm'], count=p_out, tile=t_out,
                          ds=ds, identity_skip=lp['identity_skip'])
    if p_out_pad != p_out:
        x_out, y_out = x_out[:p_out], y_out[:p_out]
    return (x_out.reshape(N, L_out, c_out), y_out.reshape(N, L_out, c_out))


def bottleneck_block_pallas(x_nlc, y_nlc, layer_params, *, kernel_size):
    for lp in layer_params:
        x_nlc, y_nlc = bottleneck_layer_pallas(x_nlc, y_nlc, lp,
                                               kernel_size=kernel_size)
    return x_nlc, y_nlc


# ----------------------------------------------------------------------------
# parameter init (PyTorch NCL layouts) and one-time kernel-layout preparation
# ----------------------------------------------------------------------------
def _init_layer_params(key, in_ch, mid_ch, out_ch, k):
    ks = jax.random.split(key, 11)
    p = dict(
        w1=0.3 * jax.random.normal(ks[0], (mid_ch, in_ch, 1), jnp.float32),
        w2=0.3 * jax.random.normal(ks[1], (mid_ch, mid_ch, k), jnp.float32),
        w3=0.3 * jax.random.normal(ks[2], (out_ch, mid_ch, 1), jnp.float32),
        g1=1.0 + 0.1 * jax.random.normal(ks[3], (mid_ch,), jnp.float32),
        b1=0.1 * jax.random.normal(ks[4], (mid_ch,), jnp.float32),
        g2=1.0 + 0.1 * jax.random.normal(ks[5], (mid_ch,), jnp.float32),
        b2=0.1 * jax.random.normal(ks[6], (mid_ch,), jnp.float32),
        g3=1.0 + 0.1 * jax.random.normal(ks[7], (out_ch,), jnp.float32),
        b3=0.1 * jax.random.normal(ks[8], (out_ch,), jnp.float32),
        identity_skip=(in_ch == out_ch),
    )
    if in_ch != out_ch:   # nn.Conv1d(in, out, 1) skip conv (with bias)
        p['ws'] = 0.3 * jax.random.normal(ks[9], (out_ch, in_ch, 1), jnp.float32)
        p['bs'] = 0.1 * jax.random.normal(ks[10], (out_ch,), jnp.float32)
    else:                 # nn.Identity -> identity 1x1 conv (reference path)
        p['ws'] = jnp.eye(out_ch, dtype=jnp.float32)[:, :, None]
        p['bs'] = jnp.zeros((out_ch,), jnp.float32)
    return p


def init_block_params(key, in_samples, out_samples, in_ch, mid_ch, out_ch, k,
                      num_layers):
    assert k % 2 == 1 and in_samples >= out_samples
    assert in_samples % out_samples == 0
    keys = jax.random.split(key, num_layers)
    layers = []
    for i in range(num_layers):
        lin_ch = in_ch if i == 0 else out_ch
        lin_sm = in_samples if i == 0 else out_samples
        p = _init_layer_params(keys[i], lin_ch, mid_ch, out_ch, k)
        p['downsample'] = lin_sm // out_samples
        layers.append(p)
    return layers


def prepare_layer_params(p, kernel_size, dtype):
    """One-time re-layout (and optional bf16 cast) into kernel matmul layout."""
    mid = p['w1'].shape[0]
    c_out = p['w3'].shape[0]
    return dict(
        downsample=p['downsample'],
        identity_skip=bool(p['identity_skip']),
        w1m=jnp.transpose(p['w1'][:, :, 0]).astype(dtype),        # (C_in, mid)
        w2m=jnp.transpose(p['w2'], (2, 1, 0)).astype(dtype),      # (k, mid_in, mid_out)
        w3m=jnp.transpose(p['w3'][:, :, 0]).astype(dtype),        # (mid, C_out)
        wsm=jnp.transpose(p['ws'][:, :, 0]).astype(dtype),        # (C_in, C_out)
        bsm=p['bs'].reshape(1, c_out).astype(jnp.float32),
        g1m=p['g1'].reshape(1, mid).astype(jnp.float32),
        b1m=p['b1'].reshape(1, mid).astype(jnp.float32),
        g2m=p['g2'].reshape(1, mid).astype(jnp.float32),
        b2m=p['b2'].reshape(1, mid).astype(jnp.float32),
        g3m=p['g3'].reshape(1, c_out).astype(jnp.float32),
        b3m=p['b3'].reshape(1, c_out).astype(jnp.float32),
    )


def prepare_block_params(layer_params, kernel_size, dtype):
    return [prepare_layer_params(p, kernel_size, dtype) for p in layer_params]


# ----------------------------------------------------------------------------
# Pure-JAX reference (mirrors PyTorch NCL semantics) for validation
# ----------------------------------------------------------------------------
def _ref_conv1d(x_ncl, w_oik, stride=1, padding=0):
    return jax.lax.conv_general_dilated(
        x_ncl, w_oik, window_strides=(stride,), padding=[(padding, padding)],
        dimension_numbers=('NCH', 'OIH', 'NCH'))


def _ref_bn_train(x_ncl, gamma, beta, eps=_EPS):
    mean = jnp.mean(x_ncl, axis=(0, 2), keepdims=True)
    var = jnp.mean((x_ncl - mean) ** 2, axis=(0, 2), keepdims=True)
    return ((x_ncl - mean) * jax.lax.rsqrt(var + eps) * gamma[None, :, None]
            + beta[None, :, None])


def _ref_layer(x, y, p, k):
    ds = p['downsample']
    pad = (k - 1) // 2
    h = _ref_conv1d(x, p['w1'])
    h = jnp.maximum(_ref_bn_train(h, p['g1'], p['b1']), 0.0)
    h = _ref_conv1d(h, p['w2'], stride=ds, padding=pad)
    h = jnp.maximum(_ref_bn_train(h, p['g2'], p['b2']), 0.0)
    h = _ref_conv1d(h, p['w3'])
    h = _ref_bn_train(h, p['g3'], p['b3'])
    ysc = _ref_conv1d(y, p['ws']) + p['bs'][None, :, None]
    n, c, l = ysc.shape
    yp = jnp.mean(ysc.reshape(n, c, l // ds, ds), axis=-1)
    added = h + yp
    return jnp.maximum(added, 0.0), added


def bottleneck_block_ref(x_ncl, y_ncl, layer_params, *, kernel_size):
    for p in layer_params:
        x_ncl, y_ncl = _ref_layer(x_ncl, y_ncl, p, kernel_size)
    return x_ncl, y_ncl


# ----------------------------------------------------------------------------
if __name__ == "__main__":
    N = 2
    in_samples, out_samples = 16, 8
    in_channels, mid_channels, out_channels = 4, 8, 16
    kernel_size, num_layers = 3, 2

    key = jax.random.PRNGKey(0)
    kx, ky, kp = jax.random.split(key, 3)
    # PyTorch Conv1d layout: (N, C, L)
    x_ncl = jax.random.normal(kx, (N, in_channels, in_samples), jnp.float32)
    y_ncl = jax.random.normal(ky, (N, in_channels, in_samples), jnp.float32)

    params = init_block_params(kp, in_samples, out_samples, in_channels,
                               mid_channels, out_channels, kernel_size,
                               num_layers)

    # channels-last inputs for the Pallas path
    x_nlc = jnp.transpose(x_ncl, (0, 2, 1))
    y_nlc = jnp.transpose(y_ncl, (0, 2, 1))

    # --- f32 path: validate against the pure-JAX NCL reference --------------
    kp32 = prepare_block_params(params, kernel_size, jnp.float32)
    xk, yk = bottleneck_block_pallas(x_nlc, y_nlc, kp32,
                                     kernel_size=kernel_size)
    xk = jax.block_until_ready(xk)
    yk = jax.block_until_ready(yk)

    xr, yr = bottleneck_block_ref(x_ncl, y_ncl, params,
                                  kernel_size=kernel_size)
    xk_ncl = jnp.transpose(xk, (0, 2, 1))
    yk_ncl = jnp.transpose(yk, (0, 2, 1))
    assert xk_ncl.shape == (N, out_channels, out_samples), xk_ncl.shape
    assert yk_ncl.shape == (N, out_channels, out_samples), yk_ncl.shape
    ex = float(jnp.max(jnp.abs(xk_ncl - xr)))
    ey = float(jnp.max(jnp.abs(yk_ncl - yr)))
    if ex > 2e-3 or ey > 2e-3:
        raise AssertionError(f"mismatch vs reference: x_err={ex} y_err={ey}")

    # --- bf16 path: production dtype (half the HBM bytes, bf16 MXU rate) ----
    kpbf = prepare_block_params(params, kernel_size, jnp.bfloat16)
    xb, yb = bottleneck_block_pallas(x_nlc, y_nlc, kpbf,
                                     kernel_size=kernel_size)
    xb = jax.block_until_ready(xb)
    yb = jax.block_until_ready(yb)
    assert xb.shape == (N, out_samples, out_channels), xb.shape
    assert yb.shape == (N, out_samples, out_channels), yb.shape
    assert bool(jnp.all(jnp.isfinite(xb.astype(jnp.float32)))), \
        "bf16 path produced non-finite values"

    print("KERNEL_OK")
</pallas_src>

<mosaic_0001>
module attributes {stable_mosaic.version = 11 : i64} {
  func.func @_mm_stats_kernel(%arg0: i32, %arg1: memref<32x4xf32, #tpu.memory_space<vmem>>, %arg2: memref<4x8xf32, #tpu.memory_space<vmem>>, %arg3: memref<32x8xf32, #tpu.memory_space<vmem>>, %arg4: memref<1x1x8xf32, #tpu.memory_space<vmem>>, %arg5: memref<1x1x8xf32, #tpu.memory_space<vmem>>) attributes {dimension_semantics = [#tpu.dimension_semantics<parallel>], iteration_bounds = array<i64: 1>, scalar_prefetch = 0 : i64, scratch_operands = 0 : i64, tpu.core_type = #tpu.core_type<tc>, window_params = [{transform_indices = @transform_0, window_bounds = array<i64: 32, 4>}, {pipeline_mode = #tpu.pipeline_mode<synchronous>, transform_indices = @transform_1, window_bounds = array<i64: 4, 8>}, {transform_indices = @transform_2, window_bounds = array<i64: 32, 8>}, {transform_indices = @transform_3, window_bounds = array<i64: 1, 1, 8>}, {transform_indices = @transform_4, window_bounds = array<i64: 1, 1, 8>}]} {
    %c0 = arith.constant 0 : index
    %c0_0 = arith.constant 0 : index
    %0 = vector.load %arg1[%c0, %c0_0] : memref<32x4xf32, #tpu.memory_space<vmem>>, vector<32x4xf32>
    %c0_1 = arith.constant 0 : index
    %c0_2 = arith.constant 0 : index
    %1 = vector.load %arg2[%c0_1, %c0_2] : memref<4x8xf32, #tpu.memory_space<vmem>>, vector<4x8xf32>
    %cst = arith.constant dense<0.000000e+00> : vector<32x8xf32>
    %2 = tpu.matmul %0, %1, %cst {dimension_numbers = #tpu.dot_dimension_numbers<[1], [0], [0], [1], [0, 0, 1, 1], [], []>} : vector<32x4xf32>, vector<4x8xf32>, vector<32x8xf32> -> vector<32x8xf32>
    %c0_3 = arith.constant 0 : index
    %c0_4 = arith.constant 0 : index
    %3 = vector.load %arg3[%c0_3, %c0_4] : memref<32x8xf32, #tpu.memory_space<vmem>>, vector<32x8xf32>
    tpu.vector_store %arg3[%c0_3, %c0_4], %2 {strides = array<i32>} : memref<32x8xf32, #tpu.memory_space<vmem>>, vector<32x8xf32>,
    %cst_5 = arith.constant dense<0.000000e+00> : vector<8xf32>
    %4 = vector.multi_reduction <add>, %2, %cst_5 [0] : vector<32x8xf32> to vector<8xf32>
    %5 = vector.shape_cast %4 : vector<8xf32> to vector<1x8xf32>
    %c0_6 = arith.constant 0 : index
    %c0_7 = arith.constant 0 : index
    %c0_8 = arith.constant 0 : index
    %6 = vector.load %arg4[%c0_6, %c0_7, %c0_8] : memref<1x1x8xf32, #tpu.memory_space<vmem>>, vector<1x1x8xf32>
    %7 = vector.shape_cast %6 : vector<1x1x8xf32> to vector<1x8xf32>
    %8 = vector.shape_cast %5 : vector<1x8xf32> to vector<1x1x8xf32>
    tpu.vector_store %arg4[%c0_6, %c0_7, %c0_8], %8 {strides = array<i32>} : memref<1x1x8xf32, #tpu.memory_space<vmem>>, vector<1x1x8xf32>,
    %9 = arith.mulf %2, %2 : vector<32x8xf32>
    %cst_9 = arith.constant dense<0.000000e+00> : vector<8xf32>
    %10 = vector.multi_reduction <add>, %9, %cst_9 [0] : vector<32x8xf32> to vector<8xf32>
    %11 = vector.shape_cast %10 : vector<8xf32> to vector<1x8xf32>
    %c0_10 = arith.constant 0 : index
    %c0_11 = arith.constant 0 : index
    %c0_12 = arith.constant 0 : index
    %12 = vector.load %arg5[%c0_10, %c0_11, %c0_12] : memref<1x1x8xf32, #tpu.memory_space<vmem>>, vector<1x1x8xf32>
    %13 = vector.shape_cast %12 : vector<1x1x8xf32> to vector<1x8xf32>
    %14 = vector.shape_cast %11 : vector<1x8xf32> to vector<1x1x8xf32>
    tpu.vector_store %arg5[%c0_10, %c0_11, %c0_12], %14 {strides = array<i32>} : memref<1x1x8xf32, #tpu.memory_space<vmem>>, vector<1x1x8xf32>,
    return
  }
  func.func @transform_0(%arg0: i32) -> (i32, i32) {
    %c0_i32 = arith.constant 0 : i32
    %c0_i32_0 = arith.constant 0 : i32
    return %arg0, %c0_i32 : i32, i32
  }
  func.func @transform_1(%arg0: i32) -> (i32, i32) {
    %c0_i32 = arith.constant 0 : i32
    %c0_i32_0 = arith.constant 0 : i32
    %c0_i32_1 = arith.constant 0 : i32
    return %c0_i32, %c0_i32_0 : i32, i32
  }
  func.func @transform_2(%arg0: i32) -> (i32, i32) {
    %c0_i32 = arith.constant 0 : i32
    %c0_i32_0 = arith.constant 0 : i32
    return %arg0, %c0_i32 : i32, i32
  }
  func.func @transform_3(%arg0: i32) -> (i32, i32, i32) {
    %c0_i32 = arith.constant 0 : i32
    %c0_i32_0 = arith.constant 0 : i32
    %c0_i32_1 = arith.constant 0 : i32
    return %arg0, %c0_i32, %c0_i32_0 : i32, i32, i32
  }
  func.func @transform_4(%arg0: i32) -> (i32, i32, i32) {
    %c0_i32 = arith.constant 0 : i32
    %c0_i32_0 = arith.constant 0 : i32
    %c0_i32_1 = arith.constant 0 : i32
    return %arg0, %c0_i32, %c0_i32_0 : i32, i32, i32
  }
}

</mosaic_0001>

<llo_original>
// kernel: tpu_custom_call.1
$region0: #{tpu_custom_call.1}
  #allocation0 [shape = 'u32[]', space=smem, size = 0x4, offset = 0x4, fixed_abs, tag = 'smem constant byte address 0x4 - core index']
  #allocation1 [shape = 'u32[72,128]{1,0:T(1,128)}', space=vmem, size = 0x9000, scoped, tag = 'internal scratch']
  %s0 = inlined_call_operand.vmem [shape: f32[32,4], index: 0, kind: input, shape index: {}]
  %s1 = inlined_call_operand.vmem [shape: f32[4,8], index: 1, kind: input, shape index: {}]
  %s2 = inlined_call_operand.vmem [shape: f32[32,8], index: 2, kind: output, shape index: {0}]
  %s3 = inlined_call_operand.hbm [shape: f32[1,1,8], index: 3, kind: output, shape index: {1}]
  %s4 = inlined_call_operand.hbm [shape: f32[1,1,8], index: 4, kind: output, shape index: {2}]
  %5 = xla_tuple %s2, %s3, %s4
  %s6 = sld [smem:[#allocation0]]
  $region34: #{tpu_custom_call.1} parent=0
    _
  %s8 = ssub.s32 1, %s6
  %s9 = scalar_select 0, %s8, %s6
  $region1: #{tpu_custom_call.1} parent=0
    #allocation2 [shape = 'u8[512]{0}', space=vmem, size = 0x400, scoped, tag = 'output window, operand 1, single buffered']
    #allocation3 [shape = 's32[1]{0}', space=sflag, size = 0x4, scoped, tag = 'scoped memory for tpu_custom_call.1']
    #allocation4 [shape = 'u8[512]{0}', space=vmem, size = 0x400, scoped, tag = 'output window, operand 2, single buffered']
    #allocation5 [shape = 's32[1]{0}', space=sflag, size = 0x4, scoped, tag = 'scoped memory for tpu_custom_call.1']
    %10 = vsyncpa [#allocation3], 0
    %11 = vsyncpa [#allocation5], 0
    // Predicated region
    $region2: #{tpu_custom_call.1} parent=1 // pred_check
      _
    $region3: #{tpu_custom_call.1} parent=1 // pred_check_branch
      %13 = sbr.rel (0) target = $region5
    $region4: #{tpu_custom_call.1} parent=1 // pred_region
      _
    $region5: #{tpu_custom_call.1} parent=1 // pred_fallthru
      _
    // Predicated region
    $region6: #{tpu_custom_call.1} parent=1 // pred_check
      _
    $region7: #{tpu_custom_call.1} parent=1 // pred_check_branch
      %15 = sbr.rel (0) target = $region9
    $region8: #{tpu_custom_call.1} parent=1 // pred_region
      _
    $region9: #{tpu_custom_call.1} parent=1 // pred_fallthru
      _
    %v16 = vld [vmem:[%s0] sm:$0xff]
    %v17 = vld [vmem:[%s0 + $0x8] sm:$0xff]
    %v18 = vld [vmem:[%s0 + $0x10] sm:$0xff]
    %v19 = vld [vmem:[%s0 + $0x18] sm:$0xff]
    %v20 = vld [vmem:[%s1] sm:$0xf]
    %vm21 = vcmask 31744
    %v23 = vsel %vm21, %v16, 0
    %v26 = vsel %vm21, %v17, 0
    %v29 = vsel %vm21, %v18, 0
    %v32 = vsel %vm21, %v19, 0
    %vm34 = vcmask 1043456
    %v36 = vsel %vm34, %v20, 0
    %38 = vmatpush.msra.mxu0 0.0
    %39 = vmatpush.msra.mxu0 0.0
    %40 = vmatpush.msra.mxu0 0.0
    %41 = vmatpush.msra.mxu0 0.0
    %42 = vmatpush.msra.mxu0 0.0
    %43 = vmatpush.msra.mxu0 0.0
    %44 = vmatpush.msra.mxu0 0.0
    %45 = vmatpush.msra.mxu0 0.0
    %46 = vmatpush.msra.mxu0 0.0
    %47 = vmatpush.msra.mxu0 0.0
    %48 = vmatpush.msra.mxu0 0.0
    %49 = vmatpush.msra.mxu0 0.0
    %50 = vmatpush.msra.mxu0 0.0
    %51 = vmatpush.msra.mxu0 0.0
    %52 = vmatpush.msra.mxu0 0.0
    %53 = vmatpush.msra.mxu0 %v36
    %54 = vmatmul.f32.gmra.mxu0 %v23
    %v55 = vpop.f32.mrf.mxu0
    %v56 = vadd.f32 0.0, %v55
    %57 = vmatmul.f32.gmra.mxu0 %v26
    %v58 = vpop.f32.mrf.mxu0
    %v59 = vadd.f32 0.0, %v58
    %60 = vmatmul.f32.gmra.mxu0 %v29
    %v61 = vpop.f32.mrf.mxu0
    %v62 = vadd.f32 0.0, %v61
    %63 = vmatmul.f32.gmra.mxu0 %v32
    %v64 = vpop.f32.mrf.mxu0
    %v65 = vadd.f32 0.0, %v64
    %66 = vdwg.mxu0
    %vm67 = vcmask 64512
    %68 = vst.msk [vmem:[%s2] sm:$0xff] %vm67, %v56
    %69 = vst.msk [vmem:[%s2 + $0x8] sm:$0xff] %vm67, %v59
    %70 = vst.msk [vmem:[%s2 + $0x10] sm:$0xff] %vm67, %v62
    %71 = vst.msk [vmem:[%s2 + $0x18] sm:$0xff] %vm67, %v65
    %v72 = vsel %vm67, %v56, 0.0
    %v73 = vsel %vm67, %v59, 0.0
    %v74 = vadd.f32 %v72, %v73
    %v75 = vsel %vm67, %v62, 0.0
    %v76 = vadd.f32 %v74, %v75
    %v77 = vsel %vm67, %v65, 0.0
    %v78 = vadd.f32 %v76, %v77
    %v79 = vrot.slane %v78, 4
    %v80 = vadd.f32 %v78, %v79
    %v81 = vrot.slane %v80, 2
    %v82 = vadd.f32 %v80, %v81
    %v83 = vrot.slane %v82, 1
    %v84 = vadd.f32 %v82, %v83
    %vm85 = vcmask 57344
    %86 = vst.msk [vmem:[#allocation2] sm:$0x1] %vm85, %v84
    %v87 = vmul.f32 %v56, %v56
    %v88 = vmul.f32 %v59, %v59
    %v89 = vmul.f32 %v62, %v62
    %v90 = vmul.f32 %v65, %v65
    %v91 = vsel %vm67, %v87, 0.0
    %v92 = vsel %vm67, %v88, 0.0
    %v93 = vadd.f32 %v91, %v92
    %v94 = vsel %vm67, %v89, 0.0
    %v95 = vadd.f32 %v93, %v94
    %v96 = vsel %vm67, %v90, 0.0
    %v97 = vadd.f32 %v95, %v96
    %v98 = vrot.slane %v97, 4
    %v99 = vadd.f32 %v97, %v98
    %v100 = vrot.slane %v99, 2
    %v101 = vadd.f32 %v99, %v100
    %v102 = vrot.slane %v101, 1
    %v103 = vadd.f32 %v101, %v102
    %104 = vst.msk [vmem:[#allocation4] sm:$0x1] %vm85, %v103
    // Predicated region
    $region10: #{tpu_custom_call.1} parent=1 // pred_check
      _
    $region11: #{tpu_custom_call.1} parent=1 // pred_check_branch
      %106 = sbr.rel (0) target = $region13
    $region12: #{tpu_custom_call.1} parent=1 // pred_region
      _
    $region13: #{tpu_custom_call.1} parent=1 // pred_fallthru
      _
    // Predicated region
    $region14: #{tpu_custom_call.1} parent=1 // pred_check
      _
    $region15: #{tpu_custom_call.1} parent=1 // pred_check_branch
      %108 = sbr.rel (0) target = $region17
    $region16: #{tpu_custom_call.1} parent=1 // pred_region
      %110 = vsyncadd [#allocation3], 0
      %s112 = sshll.u32 [#allocation2], 4
      %s113 = int_to_ptr.vmem [resolvable:$true] %s112
      %s114 = sshll.u32 %s3, 4
      %s115 = int_to_ptr.hbm [resolvable:$true] %s114
      %117 = dma.vmem_to_hbm [thread:$0]  %s113, 16, %s115, [#allocation3]
    $region17: #{tpu_custom_call.1} parent=1 // pred_fallthru
      _
    // Predicated region
    $region18: #{tpu_custom_call.1} parent=1 // pred_check
      _
    $region19: #{tpu_custom_call.1} parent=1 // pred_check_branch
      %119 = sbr.rel (0) target = $region21
    $region20: #{tpu_custom_call.1} parent=1 // pred_region
      %121 = vsyncadd [#allocation5], 0
      %s123 = sshll.u32 [#allocation4], 4
      %s124 = int_to_ptr.vmem [resolvable:$true] %s123
      %s125 = sshll.u32 %s4, 4
      %s126 = int_to_ptr.hbm [resolvable:$true] %s125
      %128 = dma.vmem_to_hbm [thread:$0]  %s124, 16, %s126, [#allocation5]
    $region21: #{tpu_custom_call.1} parent=1 // pred_fallthru
      _
    // Predicated region
    $region22: #{tpu_custom_call.1} parent=1 // pred_check
      _
    $region23: #{tpu_custom_call.1} parent=1 // pred_check_branch
      %130 = sbr.rel (0) target = $region25
    $region24: #{tpu_custom_call.1} parent=1 // pred_region
      _
    $region25: #{tpu_custom_call.1} parent=1 // pred_fallthru
      _
    // Predicated region
    $region26: #{tpu_custom_call.1} parent=1 // pred_check
      _
    $region27: #{tpu_custom_call.1} parent=1 // pred_check_branch
      %132 = sbr.rel (0) target = $region29
    $region28: #{tpu_custom_call.1} parent=1 // pred_region
      %134 = dma.done [#allocation3], 16
    $region29: #{tpu_custom_call.1} parent=1 // pred_fallthru
      _
    // Predicated region
    $region30: #{tpu_custom_call.1} parent=1 // pred_check
      _
    $region31: #{tpu_custom_call.1} parent=1 // pred_check_branch
      %136 = sbr.rel (0) target = $region33
    $region32: #{tpu_custom_call.1} parent=1 // pred_region
      %138 = dma.done [#allocation5], 16
    $region33: #{tpu_custom_call.1} parent=1 // pred_fallthru
      _
    %139 = vsyncpa [#allocation3], 1
    %140 = vsyncpa [#allocation5], 1

</llo_original>
